<compile_context>
chip_gen: v7x
topology: tpu7x:2x2x1
jax: 0.10.0
libtpu: 0.0.40
codegen_flags: <defaults>
</compile_context>

<pallas_src>
import functools

import jax
import jax.numpy as jnp
from jax.experimental import pallas as pl
from jax.experimental.pallas import tpu as pltpu


def _round_up(a, b):
    return ((a + b - 1) // b) * b


def _tpu_vmem_capacity():
    try:
        return int(getattr(pltpu.get_tpu_info(), "vmem_capacity_bytes", 128 << 20))
    except Exception:
        return 128 << 20


def _vmem_limit(need_bytes, vmem_cap):
    limit = max(need_bytes + (4 << 20), 16 << 20)
    limit = min(limit, vmem_cap - (16 << 20))
    return int(max(limit, need_bytes + (1 << 20)))


# --------------------------------------------------------------------------
# Kernels
# --------------------------------------------------------------------------
def _mean_kernel_3d(x_ref, o_ref, *, inv_k):
    # x_ref: (tn, K, D) VMEM tile; o_ref: (tn, D).  Used for f32 inputs (no
    # upcast temp) or odd-K sub-32-bit inputs (temp accounted in the budget).
    x = x_ref[...]
    if x.dtype != jnp.float32:
        x = x.astype(jnp.float32)
    o_ref[...] = (jnp.sum(x, axis=1) * inv_k).astype(o_ref.dtype)


def _mean_kernel_flat(x_ref, o_ref, *, k, inv_k, chunk, n_chunks):
    # x_ref: (tn*k, D) node-major flattened tile (dense sublane packing for
    # sub-32-bit dtypes); o_ref: (tn, D).  Reduce in node chunks so the live
    # f32 upcast intermediate stays at ~chunk*k*D*4 bytes (a few MiB max).
    d = x_ref.shape[-1]
    for c in range(n_chunks):                      # static trip count, unrolled
        xc = x_ref[pl.ds(c * chunk * k, chunk * k), :].astype(jnp.float32)
        xc = xc.reshape(chunk, k, d)               # layout-free (k % 8 == 0)
        o_ref[pl.ds(c * chunk, chunk), :] = (
            jnp.sum(xc, axis=1) * inv_k).astype(o_ref.dtype)


def _mean_kernel_ktiled(x_ref, o_ref, acc_ref, *, k_total, tk, inv_k):
    # x_ref: (tn, tk, D) tile; acc_ref: (tn, D) f32 accumulator resident
    # across the K grid axis.  The ragged last K tile is masked in-kernel
    # (no zero-padding of K through HBM).
    k = pl.program_id(1)

    @pl.when(k == 0)
    def _():
        acc_ref[...] = jnp.zeros_like(acc_ref)

    x = x_ref[...]
    if x.dtype != jnp.float32:
        x = x.astype(jnp.float32)
    if k_total % tk != 0:                          # static check
        rem = k_total - k * tk                     # >= tk except on last step
        kidx = jax.lax.broadcasted_iota(jnp.int32, (1, tk, 1), 1)
        x = jnp.where(kidx < rem, x, 0.0)
    acc_ref[...] += jnp.sum(x, axis=1)

    @pl.when(k == pl.num_programs(1) - 1)
    def _():
        o_ref[...] = (acc_ref[...] * inv_k).astype(o_ref.dtype)


# --------------------------------------------------------------------------
# Wrapper
# --------------------------------------------------------------------------
def lambda_forward(x, *, per_buffer_bytes=None):
    """Pallas equivalent of Lambda(lambda x: x.mean(dim=1)).forward(x)."""
    N, K, D = x.shape
    dtype = x.dtype
    elt = jnp.dtype(dtype).itemsize
    sub = 8 * max(1, 4 // elt)                     # sublane tile: f32 8, bf16 16, int8 32
    d_pad = _round_up(D, 128)

    vmem_cap = _tpu_vmem_capacity()
    is_v7x = vmem_cap <= (64 << 20)
    if per_buffer_bytes is None:
        per_buffer_bytes = (4 << 20) if is_v7x else (8 << 20)
    inv_k = 1.0 / K

    cost = pl.CostEstimate(
        flops=N * K * D,
        transcendentals=0,
        bytes_accessed=N * K * D * elt + N * D * elt,
    )

    # Laid-out per-node cost of a whole-K slab (3-D block) + its f32 cast temp.
    row_vmem = _round_up(K, sub) * d_pad * elt
    cast_row = K * d_pad * 4 if elt < 4 else 0

    flatten_ok = (elt < 4) and (K % 8 == 0) and (N >= 8)
    node_cost = (K * d_pad * elt) if flatten_ok else (row_vmem + cast_row)
    whole_k = 8 * node_cost <= per_buffer_bytes

    if whole_k and flatten_ok:
        # ---- Flattened dense path (sub-32-bit, K % 8 == 0). ----
        chunk = ((2 << 20) // (K * d_pad * 4)) // 8 * 8
        chunk = int(max(8, min(512, chunk if chunk > 0 else 8, (N // 8) * 8)))
        n_chunks = max(1, per_buffer_bytes // (node_cost * chunk))
        n_chunks = min(n_chunks, max(1, N // chunk))          # tn <= N (no pad)
        if is_v7x:                                            # >=4 steps for 2 TCs
            n_chunks = min(n_chunks, max(1, (N // 4) // chunk))
        tn = chunk * n_chunks

        in_block = _round_up(tn * K, sub) * d_pad * elt
        out_block = _round_up(tn, sub) * d_pad * elt
        temp = 2 * chunk * K * d_pad * 4
        need = 2 * in_block + 2 * out_block + temp

        out = pl.pallas_call(
            functools.partial(_mean_kernel_flat, k=K, inv_k=inv_k,
                              chunk=chunk, n_chunks=n_chunks),
            out_shape=jax.ShapeDtypeStruct((N, D), dtype),
            grid=(pl.cdiv(N, tn),),
            in_specs=[pl.BlockSpec((tn * K, D), lambda i: (i, 0))],
            out_specs=pl.BlockSpec((tn, D), lambda i: (i, 0)),
            compiler_params=pltpu.CompilerParams(
                dimension_semantics=("parallel",),
                vmem_limit_bytes=_vmem_limit(need, vmem_cap),
            ),
            cost_estimate=cost,
        )(x.reshape(N * K, D))                    # reshape is metadata-only
        return out

    if whole_k:
        # ---- Generic whole-K path (f32, or odd-K sub-32-bit). ----
        tn = max(8, (per_buffer_bytes // node_cost) // 8 * 8)
        if N >= 8:
            tn = min(tn, max(8, (N // 8) * 8))                # tn <= N (no pad)
            if is_v7x and N >= 32:                            # >=4 steps for 2 TCs
                tn = min(tn, max(8, (N // 4) // 8 * 8))
        else:
            tn = N

        in_block = tn * _round_up(K, sub) * d_pad * elt
        out_block = _round_up(max(tn, 1), sub) * d_pad * elt
        temp = tn * K * d_pad * 4 if elt < 4 else 0
        need = 2 * in_block + 2 * out_block + temp

        out = pl.pallas_call(
            functools.partial(_mean_kernel_3d, inv_k=inv_k),
            out_shape=jax.ShapeDtypeStruct((N, D), dtype),
            grid=(pl.cdiv(N, tn),),
            in_specs=[pl.BlockSpec((tn, K, D), lambda i: (i, 0, 0))],
            out_specs=pl.BlockSpec((tn, D), lambda i: (i, 0)),
            compiler_params=pltpu.CompilerParams(
                dimension_semantics=("parallel",),
                vmem_limit_bytes=_vmem_limit(need, vmem_cap),
            ),
            cost_estimate=cost,
        )(x)
        return out

    # ---- Large-K path: tile K too, f32 VMEM accumulator, mask ragged K. ----
    tn = 256
    while tn > 8 and (per_buffer_bytes // (tn * d_pad * elt)) < sub:
        tn //= 2
    tn = max(8, tn)
    if N >= 8:
        tn = min(tn, max(8, (N // 8) * 8))
        if is_v7x and N >= 32:
            tn = min(tn, max(8, (N // 4) // 8 * 8))
    else:
        tn = N
    tk = (per_buffer_bytes // (max(tn, 1) * d_pad * elt)) // sub * sub
    tk = int(max(sub, min(tk, max(8, (K // 8) * 8))))         # tk <= K (no pad)

    in_block = tn * _round_up(tk, sub) * d_pad * elt
    out_block = _round_up(max(tn, 1), sub) * d_pad * elt
    acc_bytes = tn * d_pad * 4
    temp = tn * tk * d_pad * 4 if elt < 4 else 0
    need = 2 * in_block + 2 * out_block + acc_bytes + temp

    out = pl.pallas_call(
        functools.partial(_mean_kernel_ktiled, k_total=K, tk=tk, inv_k=inv_k),
        out_shape=jax.ShapeDtypeStruct((N, D), dtype),
        grid=(pl.cdiv(N, tn), pl.cdiv(K, tk)),
        in_specs=[pl.BlockSpec((tn, tk, D), lambda i, k: (i, k, 0))],
        out_specs=pl.BlockSpec((tn, D), lambda i, k: (i, 0)),
        scratch_shapes=[pltpu.VMEM((tn, D), jnp.float32)],
        compiler_params=pltpu.CompilerParams(
            dimension_semantics=("parallel", "arbitrary"),
            vmem_limit_bytes=_vmem_limit(need, vmem_cap),
        ),
        cost_estimate=cost,
    )(x)
    return out


if __name__ == "__main__":
    key = jax.random.PRNGKey(0)
    k1, k2, k3 = jax.random.split(key, 3)

    # Check 1: canonical f32 shape -> whole-K 3-D path.
    x = jax.random.normal(k1, (64, 8, 128), dtype=jnp.float32)
    out = jax.block_until_ready(lambda_forward(x))
    ref = jnp.mean(x, axis=1)
    assert out.shape == ref.shape and out.dtype == ref.dtype
    assert float(jnp.max(jnp.abs(out - ref))) < 1e-5

    # Check 2: ragged N + bf16 -> flattened dense path (ragged grid, no HBM pad).
    xb = jax.random.normal(k2, (50, 8, 128), dtype=jnp.bfloat16)
    outb = jax.block_until_ready(lambda_forward(xb))
    refb = jnp.mean(xb.astype(jnp.float32), axis=1)
    assert outb.shape == (50, 128) and outb.dtype == jnp.bfloat16
    assert float(jnp.max(jnp.abs(outb.astype(jnp.float32) - refb))) < 1e-2

    # Check 3: tiny per-buffer budget forces the K-tiled path with a ragged,
    # in-kernel-masked final K tile and a ragged N tail (no padding anywhere).
    xk = jax.random.normal(k3, (40, 33, 128), dtype=jnp.float32)
    outk = jax.block_until_ready(lambda_forward(xk, per_buffer_bytes=64 * 1024))
    refk = jnp.mean(xk, axis=1)
    assert outk.shape == refk.shape and outk.dtype == refk.dtype
    assert float(jnp.max(jnp.abs(outk - refk))) < 1e-5

    print("KERNEL_OK")
</pallas_src>

<mosaic_0001>
module attributes {stable_mosaic.version = 11 : i64} {
  func.func @_mean_kernel_3d(%arg0: i32, %arg1: memref<64x8x128xf32, #tpu.memory_space<vmem>>, %arg2: memref<64x128xf32, #tpu.memory_space<vmem>>) attributes {dimension_semantics = [#tpu.dimension_semantics<parallel>], iteration_bounds = array<i64: 1>, scalar_prefetch = 0 : i64, scratch_operands = 0 : i64, tpu.core_type = #tpu.core_type<tc>, window_params = [{transform_indices = @transform_0, window_bounds = array<i64: 64, 8, 128>}, {transform_indices = @transform_1, window_bounds = array<i64: 64, 128>}]} {
    %c0 = arith.constant 0 : index
    %c0_0 = arith.constant 0 : index
    %c0_1 = arith.constant 0 : index
    %0 = vector.load %arg1[%c0, %c0_0, %c0_1] : memref<64x8x128xf32, #tpu.memory_space<vmem>>, vector<64x8x128xf32>
    %cst = arith.constant dense<0.000000e+00> : vector<64x128xf32>
    %1 = vector.multi_reduction <add>, %0, %cst [1] : vector<64x8x128xf32> to vector<64x128xf32>
    %cst_2 = arith.constant 1.250000e-01 : f32
    %2 = vector.broadcast %cst_2 : f32 to vector<64x128xf32>
    %3 = arith.mulf %1, %2 : vector<64x128xf32>
    %c0_3 = arith.constant 0 : index
    %c0_4 = arith.constant 0 : index
    %4 = vector.load %arg2[%c0_3, %c0_4] : memref<64x128xf32, #tpu.memory_space<vmem>>, vector<64x128xf32>
    tpu.vector_store %arg2[%c0_3, %c0_4], %3 {strides = array<i32>} : memref<64x128xf32, #tpu.memory_space<vmem>>, vector<64x128xf32>,
    return
  }
  func.func @transform_0(%arg0: i32) -> (i32, i32, i32) {
    %c0_i32 = arith.constant 0 : i32
    %c0_i32_0 = arith.constant 0 : i32
    %c0_i32_1 = arith.constant 0 : i32
    return %arg0, %c0_i32, %c0_i32_0 : i32, i32, i32
  }
  func.func @transform_1(%arg0: i32) -> (i32, i32) {
    %c0_i32 = arith.constant 0 : i32
    %c0_i32_0 = arith.constant 0 : i32
    return %arg0, %c0_i32 : i32, i32
  }
}

</mosaic_0001>

<llo_original>
// kernel: tpu_custom_call.1
$region0: #{tpu_custom_call.1}
  #allocation0 [shape = 'u32[]', space=smem, size = 0x4, offset = 0x4, fixed_abs, tag = 'smem constant byte address 0x4 - core index']
  #allocation1 [shape = 'u32[144,128]{1,0:T(1,128)}', space=vmem, size = 0x12000, scoped, tag = 'internal scratch']
  %s0 = inlined_call_operand.hbm [shape: f32[64,8,128], index: 0, kind: input, shape index: {}]
  %s1 = inlined_call_operand.hbm [shape: f32[64,128], index: 1, kind: output, shape index: {}]
  %s2 = sld [smem:[#allocation0]]
  $region18: #{tpu_custom_call.1} parent=0
    _
  %s4 = ssub.s32 1, %s2
  %s5 = scalar_select 0, %s4, %s2
  $region1: #{tpu_custom_call.1} parent=0
    #allocation2 [shape = 'u8[262144]{0}', space=vmem, size = 0x40000, scoped, tag = 'input window, operand 0, single buffered']
    #allocation3 [shape = 's32[1]{0}', space=sflag, size = 0x4, scoped, tag = 'scoped memory for tpu_custom_call.1']
    #allocation4 [shape = 's32[1]{0}', space=sflag, size = 0x4, scoped, tag = 'scoped memory for tpu_custom_call.1']
    #allocation5 [shape = 'u8[32768]{0}', space=vmem, size = 0x8000, scoped, tag = 'output window, operand 0, single buffered']
    %6 = vsyncpa [#allocation3], 0
    %7 = vsyncpa [#allocation4], 0
    // Predicated region
    $region2: #{tpu_custom_call.1} parent=1 // pred_check
      _
    $region3: #{tpu_custom_call.1} parent=1 // pred_check_branch
      %9 = sbr.rel (0) target = $region5
    $region4: #{tpu_custom_call.1} parent=1 // pred_region
      %s11 = ssub.s32 8192, 8192
      %12 = vsyncadd [#allocation3], %s11
      %s13 = sshll.u32 [#allocation2], 4
      %s14 = int_to_ptr.vmem [resolvable:$true] %s13
      %19 = dma.hbm_to_vmem [thread:$0]  %s0, 8192, %s14, [#allocation3], 128, 128, 8
    $region5: #{tpu_custom_call.1} parent=1 // pred_fallthru
      _
    // Predicated region
    $region6: #{tpu_custom_call.1} parent=1 // pred_check
      _
    $region7: #{tpu_custom_call.1} parent=1 // pred_check_branch
      %21 = sbr.rel (0) target = $region9
    $region8: #{tpu_custom_call.1} parent=1 // pred_region
      %22 = dma.done [#allocation3], 8192
    $region9: #{tpu_custom_call.1} parent=1 // pred_fallthru
      _
    %v23 = vld [vmem:[#allocation2] sm:$0xff]
    %v24 = vld [vmem:[#allocation2 + $0x8] sm:$0xff]
    %v25 = vld [vmem:[#allocation2 + $0x10] sm:$0xff]
    %v26 = vld [vmem:[#allocation2 + $0x18] sm:$0xff]
    %v27 = vld [vmem:[#allocation2 + $0x20] sm:$0xff]
    %v28 = vld [vmem:[#allocation2 + $0x28] sm:$0xff]
    %v29 = vld [vmem:[#allocation2 + $0x30] sm:$0xff]
    %v30 = vld [vmem:[#allocation2 + $0x38] sm:$0xff]
    %v31 = vld [vmem:[#allocation2 + $0x40] sm:$0xff]
    %v32 = vld [vmem:[#allocation2 + $0x48] sm:$0xff]
    %v33 = vld [vmem:[#allocation2 + $0x50] sm:$0xff]
    %v34 = vld [vmem:[#allocation2 + $0x58] sm:$0xff]
    %v35 = vld [vmem:[#allocation2 + $0x60] sm:$0xff]
    %v36 = vld [vmem:[#allocation2 + $0x68] sm:$0xff]
    %v37 = vld [vmem:[#allocation2 + $0x70] sm:$0xff]
    %v38 = vld [vmem:[#allocation2 + $0x78] sm:$0xff]
    %v39 = vld [vmem:[#allocation2 + $0x80] sm:$0xff]
    %v40 = vld [vmem:[#allocation2 + $0x88] sm:$0xff]
    %v41 = vld [vmem:[#allocation2 + $0x90] sm:$0xff]
    %v42 = vld [vmem:[#allocation2 + $0x98] sm:$0xff]
    %v43 = vld [vmem:[#allocation2 + $0xa0] sm:$0xff]
    %v44 = vld [vmem:[#allocation2 + $0xa8] sm:$0xff]
    %v45 = vld [vmem:[#allocation2 + $0xb0] sm:$0xff]
    %v46 = vld [vmem:[#allocation2 + $0xb8] sm:$0xff]
    %v47 = vld [vmem:[#allocation2 + $0xc0] sm:$0xff]
    %v48 = vld [vmem:[#allocation2 + $0xc8] sm:$0xff]
    %v49 = vld [vmem:[#allocation2 + $0xd0] sm:$0xff]
    %v50 = vld [vmem:[#allocation2 + $0xd8] sm:$0xff]
    %v51 = vld [vmem:[#allocation2 + $0xe0] sm:$0xff]
    %v52 = vld [vmem:[#allocation2 + $0xe8] sm:$0xff]
    %v53 = vld [vmem:[#allocation2 + $0xf0] sm:$0xff]
    %v54 = vld [vmem:[#allocation2 + $0xf8] sm:$0xff]
    %v55 = vld [vmem:[#allocation2 + $0x100] sm:$0xff]
    %v56 = vld [vmem:[#allocation2 + $0x108] sm:$0xff]
    %v57 = vld [vmem:[#allocation2 + $0x110] sm:$0xff]
    %v58 = vld [vmem:[#allocation2 + $0x118] sm:$0xff]
    %v59 = vld [vmem:[#allocation2 + $0x120] sm:$0xff]
    %v60 = vld [vmem:[#allocation2 + $0x128] sm:$0xff]
    %v61 = vld [vmem:[#allocation2 + $0x130] sm:$0xff]
    %v62 = vld [vmem:[#allocation2 + $0x138] sm:$0xff]
    %v63 = vld [vmem:[#allocation2 + $0x140] sm:$0xff]
    %v64 = vld [vmem:[#allocation2 + $0x148] sm:$0xff]
    %v65 = vld [vmem:[#allocation2 + $0x150] sm:$0xff]
    %v66 = vld [vmem:[#allocation2 + $0x158] sm:$0xff]
    %v67 = vld [vmem:[#allocation2 + $0x160] sm:$0xff]
    %v68 = vld [vmem:[#allocation2 + $0x168] sm:$0xff]
    %v69 = vld [vmem:[#allocation2 + $0x170] sm:$0xff]
    %v70 = vld [vmem:[#allocation2 + $0x178] sm:$0xff]
    %v71 = vld [vmem:[#allocation2 + $0x180] sm:$0xff]
    %v72 = vld [vmem:[#allocation2 + $0x188] sm:$0xff]
    %v73 = vld [vmem:[#allocation2 + $0x190] sm:$0xff]
    %v74 = vld [vmem:[#allocation2 + $0x198] sm:$0xff]
    %v75 = vld [vmem:[#allocation2 + $0x1a0] sm:$0xff]
    %v76 = vld [vmem:[#allocation2 + $0x1a8] sm:$0xff]
    %v77 = vld [vmem:[#allocation2 + $0x1b0] sm:$0xff]
    %v78 = vld [vmem:[#allocation2 + $0x1b8] sm:$0xff]
    %v79 = vld [vmem:[#allocation2 + $0x1c0] sm:$0xff]
    %v80 = vld [vmem:[#allocation2 + $0x1c8] sm:$0xff]
    %v81 = vld [vmem:[#allocation2 + $0x1d0] sm:$0xff]
    %v82 = vld [vmem:[#allocation2 + $0x1d8] sm:$0xff]
    %v83 = vld [vmem:[#allocation2 + $0x1e0] sm:$0xff]
    %v84 = vld [vmem:[#allocation2 + $0x1e8] sm:$0xff]
    %v85 = vld [vmem:[#allocation2 + $0x1f0] sm:$0xff]
    %v86 = vld [vmem:[#allocation2 + $0x1f8] sm:$0xff]
    %v87 = vrot.slane %v23, 4
    %v88 = vadd.f32 %v23, %v87
    %v89 = vrot.slane %v88, 2
    %v90 = vadd.f32 %v88, %v89
    %v91 = vrot.slane %v90, 1
    %v92 = vadd.f32 %v90, %v91
    %v93 = vrot.slane %v24, 4
    %v94 = vadd.f32 %v24, %v93
    %v95 = vrot.slane %v94, 2
    %v96 = vadd.f32 %v94, %v95
    %v97 = vrot.slane %v96, 1
    %v98 = vadd.f32 %v96, %v97
    %v99 = vrot.slane %v25, 4
    %v100 = vadd.f32 %v25, %v99
    %v101 = vrot.slane %v100, 2
    %v102 = vadd.f32 %v100, %v101
    %v103 = vrot.slane %v102, 1
    %v104 = vadd.f32 %v102, %v103
    %v105 = vrot.slane %v26, 4
    %v106 = vadd.f32 %v26, %v105
    %v107 = vrot.slane %v106, 2
    %v108 = vadd.f32 %v106, %v107
    %v109 = vrot.slane %v108, 1
    %v110 = vadd.f32 %v108, %v109
    %v111 = vrot.slane %v27, 4
    %v112 = vadd.f32 %v27, %v111
    %v113 = vrot.slane %v112, 2
    %v114 = vadd.f32 %v112, %v113
    %v115 = vrot.slane %v114, 1
    %v116 = vadd.f32 %v114, %v115
    %v117 = vrot.slane %v28, 4
    %v118 = vadd.f32 %v28, %v117
    %v119 = vrot.slane %v118, 2
    %v120 = vadd.f32 %v118, %v119
    %v121 = vrot.slane %v120, 1
    %v122 = vadd.f32 %v120, %v121
    %v123 = vrot.slane %v29, 4
    %v124 = vadd.f32 %v29, %v123
    %v125 = vrot.slane %v124, 2
    %v126 = vadd.f32 %v124, %v125
    %v127 = vrot.slane %v126, 1
    %v128 = vadd.f32 %v126, %v127
    %v129 = vrot.slane %v30, 4
    %v130 = vadd.f32 %v30, %v129
    %v131 = vrot.slane %v130, 2
    %v132 = vadd.f32 %v130, %v131
    %v133 = vrot.slane %v132, 1
    %v134 = vadd.f32 %v132, %v133
    %v135 = vrot.slane %v31, 4
    %v136 = vadd.f32 %v31, %v135
    %v137 = vrot.slane %v136, 2
    %v138 = vadd.f32 %v136, %v137
    %v139 = vrot.slane %v138, 1
    %v140 = vadd.f32 %v138, %v139
    %v141 = vrot.slane %v32, 4
    %v142 = vadd.f32 %v32, %v141
    %v143 = vrot.slane %v142, 2
    %v144 = vadd.f32 %v142, %v143
    %v145 = vrot.slane %v144, 1
    %v146 = vadd.f32 %v144, %v145
    %v147 = vrot.slane %v33, 4
    %v148 = vadd.f32 %v33, %v147
    %v149 = vrot.slane %v148, 2
    %v150 = vadd.f32 %v148, %v149
    %v151 = vrot.slane %v150, 1
    %v152 = vadd.f32 %v150, %v151
    %v153 = vrot.slane %v34, 4
    %v154 = vadd.f32 %v34, %v153
    %v155 = vrot.slane %v154, 2
    %v156 = vadd.f32 %v154, %v155
    %v157 = vrot.slane %v156, 1
    %v158 = vadd.f32 %v156, %v157
    %v159 = vrot.slane %v35, 4
    %v160 = vadd.f32 %v35, %v159
    %v161 = vrot.slane %v160, 2
    %v162 = vadd.f32 %v160, %v161
    %v163 = vrot.slane %v162, 1
    %v164 = vadd.f32 %v162, %v163
    %v165 = vrot.slane %v36, 4
    %v166 = vadd.f32 %v36, %v165
    %v167 = vrot.slane %v166, 2
    %v168 = vadd.f32 %v166, %v167
    %v169 = vrot.slane %v168, 1
    %v170 = vadd.f32 %v168, %v169
    %v171 = vrot.slane %v37, 4
    %v172 = vadd.f32 %v37, %v171
    %v173 = vrot.slane %v172, 2
    %v174 = vadd.f32 %v172, %v173
    %v175 = vrot.slane %v174, 1
    %v176 = vadd.f32 %v174, %v175
    %v177 = vrot.slane %v38, 4
    %v178 = vadd.f32 %v38, %v177
    %v179 = vrot.slane %v178, 2
    %v180 = vadd.f32 %v178, %v179
    %v181 = vrot.slane %v180, 1
    %v182 = vadd.f32 %v180, %v181
    %v183 = vrot.slane %v39, 4
    %v184 = vadd.f32 %v39, %v183
    %v185 = vrot.slane %v184, 2
    %v186 = vadd.f32 %v184, %v185
    %v187 = vrot.slane %v186, 1
    %v188 = vadd.f32 %v186, %v187
    %v189 = vrot.slane %v40, 4
    %v190 = vadd.f32 %v40, %v189
    %v191 = vrot.slane %v190, 2
    %v192 = vadd.f32 %v190, %v191
    %v193 = vrot.slane %v192, 1
    %v194 = vadd.f32 %v192, %v193
    %v195 = vrot.slane %v41, 4
    %v196 = vadd.f32 %v41, %v195
    %v197 = vrot.slane %v196, 2
    %v198 = vadd.f32 %v196, %v197
    %v199 = vrot.slane %v198, 1
    %v200 = vadd.f32 %v198, %v199
    %v201 = vrot.slane %v42, 4
    %v202 = vadd.f32 %v42, %v201
    %v203 = vrot.slane %v202, 2
    %v204 = vadd.f32 %v202, %v203
    %v205 = vrot.slane %v204, 1
    %v206 = vadd.f32 %v204, %v205
    %v207 = vrot.slane %v43, 4
    %v208 = vadd.f32 %v43, %v207
    %v209 = vrot.slane %v208, 2
    %v210 = vadd.f32 %v208, %v209
    %v211 = vrot.slane %v210, 1
    %v212 = vadd.f32 %v210, %v211
    %v213 = vrot.slane %v44, 4
    %v214 = vadd.f32 %v44, %v213
    %v215 = vrot.slane %v214, 2
    %v216 = vadd.f32 %v214, %v215
    %v217 = vrot.slane %v216, 1
    %v218 = vadd.f32 %v216, %v217
    %v219 = vrot.slane %v45, 4
    %v220 = vadd.f32 %v45, %v219
    %v221 = vrot.slane %v220, 2
    %v222 = vadd.f32 %v220, %v221
    %v223 = vrot.slane %v222, 1
    %v224 = vadd.f32 %v222, %v223
    %v225 = vrot.slane %v46, 4
    %v226 = vadd.f32 %v46, %v225
    %v227 = vrot.slane %v226, 2
    %v228 = vadd.f32 %v226, %v227
    %v229 = vrot.slane %v228, 1
    %v230 = vadd.f32 %v228, %v229
    %v231 = vrot.slane %v47, 4
    %v232 = vadd.f32 %v47, %v231
    %v233 = vrot.slane %v232, 2
    %v234 = vadd.f32 %v232, %v233
    %v235 = vrot.slane %v234, 1
    %v236 = vadd.f32 %v234, %v235
    %v237 = vrot.slane %v48, 4
    %v238 = vadd.f32 %v48, %v237
    %v239 = vrot.slane %v238, 2
    %v240 = vadd.f32 %v238, %v239
    %v241 = vrot.slane %v240, 1
    %v242 = vadd.f32 %v240, %v241
    %v243 = vrot.slane %v49, 4
    %v244 = vadd.f32 %v49, %v243
    %v245 = vrot.slane %v244, 2
    %v246 = vadd.f32 %v244, %v245
    %v247 = vrot.slane %v246, 1
    %v248 = vadd.f32 %v246, %v247
    %v249 = vrot.slane %v50, 4
    %v250 = vadd.f32 %v50, %v249
    %v251 = vrot.slane %v250, 2
    %v252 = vadd.f32 %v250, %v251
    %v253 = vrot.slane %v252, 1
    %v254 = vadd.f32 %v252, %v253
    %v255 = vrot.slane %v51, 4
    %v256 = vadd.f32 %v51, %v255
    %v257 = vrot.slane %v256, 2
    %v258 = vadd.f32 %v256, %v257
    %v259 = vrot.slane %v258, 1
    %v260 = vadd.f32 %v258, %v259
    %v261 = vrot.slane %v52, 4
    %v262 = vadd.f32 %v52, %v261
    %v263 = vrot.slane %v262, 2
    %v264 = vadd.f32 %v262, %v263
    %v265 = vrot.slane %v264, 1
    %v266 = vadd.f32 %v264, %v265
    %v267 = vrot.slane %v53, 4
    %v268 = vadd.f32 %v53, %v267
    %v269 = vrot.slane %v268, 2
    %v270 = vadd.f32 %v268, %v269
    %v271 = vrot.slane %v270, 1
    %v272 = vadd.f32 %v270, %v271
    %v273 = vrot.slane %v54, 4
    %v274 = vadd.f32 %v54, %v273
    %v275 = vrot.slane %v274, 2
    %v276 = vadd.f32 %v274, %v275
    %v277 = vrot.slane %v276, 1
    %v278 = vadd.f32 %v276, %v277
    %v279 = vrot.slane %v55, 4
    %v280 = vadd.f32 %v55, %v279
    %v281 = vrot.slane %v280, 2
    %v282 = vadd.f32 %v280, %v281
    %v283 = vrot.slane %v282, 1
    %v284 = vadd.f32 %v282, %v283
    %v285 = vrot.slane %v56, 4
    %v286 = vadd.f32 %v56, %v285
    %v287 = vrot.slane %v286, 2
    %v288 = vadd.f32 %v286, %v287
    %v289 = vrot.slane %v288, 1
    %v290 = vadd.f32 %v288, %v289
    %v291 = vrot.slane %v57, 4
    %v292 = vadd.f32 %v57, %v291
    %v293 = vrot.slane %v292, 2
    %v294 = vadd.f32 %v292, %v293
    %v295 = vrot.slane %v294, 1
    %v296 = vadd.f32 %v294, %v295
    %v297 = vrot.slane %v58, 4
    %v298 = vadd.f32 %v58, %v297
    %v299 = vrot.slane %v298, 2
    %v300 = vadd.f32 %v298, %v299
    %v301 = vrot.slane %v300, 1
    %v302 = vadd.f32 %v300, %v301
    %v303 = vrot.slane %v59, 4
    %v304 = vadd.f32 %v59, %v303
    %v305 = vrot.slane %v304, 2
    %v306 = vadd.f32 %v304, %v305
    %v307 = vrot.slane %v306, 1
    %v308 = vadd.f32 %v306, %v307
    %v309 = vrot.slane %v60, 4
    %v310 = vadd.f32 %v60, %v309
    %v311 = vrot.slane %v310, 2
    %v312 = vadd.f32 %v310, %v311
    %v313 = vrot.slane %v312, 1
    %v314 = vadd.f32 %v312, %v313
    %v315 = vrot.slane %v61, 4
    %v316 = vadd.f32 %v61, %v315
    %v317 = vrot.slane %v316, 2
    %v318 = vadd.f32 %v316, %v317
    %v319 = vrot.slane %v318, 1
    %v320 = vadd.f32 %v318, %v319
    %v321 = vrot.slane %v62, 4
    %v322 = vadd.f32 %v62, %v321
    %v323 = vrot.slane %v322, 2
    %v324 = vadd.f32 %v322, %v323
    %v325 = vrot.slane %v324, 1
    %v326 = vadd.f32 %v324, %v325
    %v327 = vrot.slane %v63, 4
    %v328 = vadd.f32 %v63, %v327
    %v329 = vrot.slane %v328, 2
    %v330 = vadd.f32 %v328, %v329
    %v331 = vrot.slane %v330, 1
    %v332 = vadd.f32 %v330, %v331
    %v333 = vrot.slane %v64, 4
    %v334 = vadd.f32 %v64, %v333
    %v335 = vrot.slane %v334, 2
    %v336 = vadd.f32 %v334, %v335
    %v337 = vrot.slane %v336, 1
    %v338 = vadd.f32 %v336, %v337
    %v339 = vrot.slane %v65, 4
    %v340 = vadd.f32 %v65, %v339
    %v341 = vrot.slane %v340, 2
    %v342 = vadd.f32 %v340, %v341
    %v343 = vrot.slane %v342, 1
    %v344 = vadd.f32 %v342, %v343
    %v345 = vrot.slane %v66, 4
    %v346 = vadd.f32 %v66, %v345
    %v347 = vrot.slane %v346, 2
    %v348 = vadd.f32 %v346, %v347
    %v349 = vrot.slane %v348, 1
    %v350 = vadd.f32 %v348, %v349
    %v351 = vrot.slane %v67, 4
    %v352 = vadd.f32 %v67, %v351
    %v353 = vrot.slane %v352, 2
    %v354 = vadd.f32 %v352, %v353
    %v355 = vrot.slane %v354, 1
    %v356 = vadd.f32 %v354, %v355
    %v357 = vrot.slane %v68, 4
    %v358 = vadd.f32 %v68, %v357
    %v359 = vrot.slane %v358, 2
    %v360 = vadd.f32 %v358, %v359
    %v361 = vrot.slane %v360, 1
    %v362 = vadd.f32 %v360, %v361
    %v363 = vrot.slane %v69, 4
    %v364 = vadd.f32 %v69, %v363
    %v365 = vrot.slane %v364, 2
    %v366 = vadd.f32 %v364, %v365
    %v367 = vrot.slane %v366, 1
    %v368 = vadd.f32 %v366, %v367
    %v369 = vrot.slane %v70, 4
    %v370 = vadd.f32 %v70, %v369
    %v371 = vrot.slane %v370, 2
    %v372 = vadd.f32 %v370, %v371
    %v373 = vrot.slane %v372, 1
    %v374 = vadd.f32 %v372, %v373
    %v375 = vrot.slane %v71, 4
    %v376 = vadd.f32 %v71, %v375
    %v377 = vrot.slane %v376, 2
    %v378 = vadd.f32 %v376, %v377
    %v379 = vrot.slane %v378, 1
    %v380 = vadd.f32 %v378, %v379
    %v381 = vrot.slane %v72, 4
    %v382 = vadd.f32 %v72, %v381
    %v383 = vrot.slane %v382, 2
    %v384 = vadd.f32 %v382, %v383
    %v385 = vrot.slane %v384, 1
    %v386 = vadd.f32 %v384, %v385
    %v387 = vrot.slane %v73, 4
    %v388 = vadd.f32 %v73, %v387
    %v389 = vrot.slane %v388, 2
    %v390 = vadd.f32 %v388, %v389
    %v391 = vrot.slane %v390, 1
    %v392 = vadd.f32 %v390, %v391
    %v393 = vrot.slane %v74, 4
    %v394 = vadd.f32 %v74, %v393
    %v395 = vrot.slane %v394, 2
    %v396 = vadd.f32 %v394, %v395
    %v397 = vrot.slane %v396, 1
    %v398 = vadd.f32 %v396, %v397
    %v399 = vrot.slane %v75, 4
    %v400 = vadd.f32 %v75, %v399
    %v401 = vrot.slane %v400, 2
    %v402 = vadd.f32 %v400, %v401
    %v403 = vrot.slane %v402, 1
    %v404 = vadd.f32 %v402, %v403
    %v405 = vrot.slane %v76, 4
    %v406 = vadd.f32 %v76, %v405
    %v407 = vrot.slane %v406, 2
    %v408 = vadd.f32 %v406, %v407
    %v409 = vrot.slane %v408, 1
    %v410 = vadd.f32 %v408, %v409
    %v411 = vrot.slane %v77, 4
    %v412 = vadd.f32 %v77, %v411
    %v413 = vrot.slane %v412, 2
    %v414 = vadd.f32 %v412, %v413
    %v415 = vrot.slane %v414, 1
    %v416 = vadd.f32 %v414, %v415
    %v417 = vrot.slane %v78, 4
    %v418 = vadd.f32 %v78, %v417
    %v419 = vrot.slane %v418, 2
    %v420 = vadd.f32 %v418, %v419
    %v421 = vrot.slane %v420, 1
    %v422 = vadd.f32 %v420, %v421
    %v423 = vrot.slane %v79, 4
    %v424 = vadd.f32 %v79, %v423
    %v425 = vrot.slane %v424, 2
    %v426 = vadd.f32 %v424, %v425
    %v427 = vrot.slane %v426, 1
    %v428 = vadd.f32 %v426, %v427
    %v429 = vrot.slane %v80, 4
    %v430 = vadd.f32 %v80, %v429
    %v431 = vrot.slane %v430, 2
    %v432 = vadd.f32 %v430, %v431
    %v433 = vrot.slane %v432, 1
    %v434 = vadd.f32 %v432, %v433
    %v435 = vrot.slane %v81, 4
    %v436 = vadd.f32 %v81, %v435
    %v437 = vrot.slane %v436, 2
    %v438 = vadd.f32 %v436, %v437
    %v439 = vrot.slane %v438, 1
    %v440 = vadd.f32 %v438, %v439
    %v441 = vrot.slane %v82, 4
    %v442 = vadd.f32 %v82, %v441
    %v443 = vrot.slane %v442, 2
    %v444 = vadd.f32 %v442, %v443
    %v445 = vrot.slane %v444, 1
    %v446 = vadd.f32 %v444, %v445
    %v447 = vrot.slane %v83, 4
    %v448 = vadd.f32 %v83, %v447
    %v449 = vrot.slane %v448, 2
    %v450 = vadd.f32 %v448, %v449
    %v451 = vrot.slane %v450, 1
    %v452 = vadd.f32 %v450, %v451
    %v453 = vrot.slane %v84, 4
    %v454 = vadd.f32 %v84, %v453
    %v455 = vrot.slane %v454, 2
    %v456 = vadd.f32 %v454, %v455
    %v457 = vrot.slane %v456, 1
    %v458 = vadd.f32 %v456, %v457
    %v459 = vrot.slane %v85, 4
    %v460 = vadd.f32 %v85, %v459
    %v461 = vrot.slane %v460, 2
    %v462 = vadd.f32 %v460, %v461
    %v463 = vrot.slane %v462, 1
    %v464 = vadd.f32 %v462, %v463
    %v465 = vrot.slane %v86, 4
    %v466 = vadd.f32 %v86, %v465
    %v467 = vrot.slane %v466, 2
    %v468 = vadd.f32 %v466, %v467
    %v469 = vrot.slane %v468, 1
    %v470 = vadd.f32 %v468, %v469
    %v471 = vmul.f32 %v92, 0.125
    %v472 = vmul.f32 %v98, 0.125
    %v473 = vmul.f32 %v104, 0.125
    %v474 = vmul.f32 %v110, 0.125
    %v475 = vmul.f32 %v116, 0.125
    %v476 = vmul.f32 %v122, 0.125
    %v477 = vmul.f32 %v128, 0.125
    %v478 = vmul.f32 %v134, 0.125
    %v479 = vmul.f32 %v140, 0.125
    %v480 = vmul.f32 %v146, 0.125
    %v481 = vmul.f32 %v152, 0.125
    %v482 = vmul.f32 %v158, 0.125
    %v483 = vmul.f32 %v164, 0.125
    %v484 = vmul.f32 %v170, 0.125
    %v485 = vmul.f32 %v176, 0.125
    %v486 = vmul.f32 %v182, 0.125
    %v487 = vmul.f32 %v188, 0.125
    %v488 = vmul.f32 %v194, 0.125
    %v489 = vmul.f32 %v200, 0.125
    %v490 = vmul.f32 %v206, 0.125
    %v491 = vmul.f32 %v212, 0.125
    %v492 = vmul.f32 %v218, 0.125
    %v493 = vmul.f32 %v224, 0.125
    %v494 = vmul.f32 %v230, 0.125
    %v495 = vmul.f32 %v236, 0.125
    %v496 = vmul.f32 %v242, 0.125
    %v497 = vmul.f32 %v248, 0.125
    %v498 = vmul.f32 %v254, 0.125
    %v499 = vmul.f32 %v260, 0.125
    %v500 = vmul.f32 %v266, 0.125
    %v501 = vmul.f32 %v272, 0.125
    %v502 = vmul.f32 %v278, 0.125
    %v503 = vmul.f32 %v284, 0.125
    %v504 = vmul.f32 %v290, 0.125
    %v505 = vmul.f32 %v296, 0.125
    %v506 = vmul.f32 %v302, 0.125
    %v507 = vmul.f32 %v308, 0.125
    %v508 = vmul.f32 %v314, 0.125
    %v509 = vmul.f32 %v320, 0.125
    %v510 = vmul.f32 %v326, 0.125
    %v511 = vmul.f32 %v332, 0.125
    %v512 = vmul.f32 %v338, 0.125
    %v513 = vmul.f32 %v344, 0.125
    %v514 = vmul.f32 %v350, 0.125
    %v515 = vmul.f32 %v356, 0.125
    %v516 = vmul.f32 %v362, 0.125
    %v517 = vmul.f32 %v368, 0.125
    %v518 = vmul.f32 %v374, 0.125
    %v519 = vmul.f32 %v380, 0.125
    %v520 = vmul.f32 %v386, 0.125
    %v521 = vmul.f32 %v392, 0.125
    %v522 = vmul.f32 %v398, 0.125
    %v523 = vmul.f32 %v404, 0.125
    %v524 = vmul.f32 %v410, 0.125
    %v525 = vmul.f32 %v416, 0.125
    %v526 = vmul.f32 %v422, 0.125
    %v527 = vmul.f32 %v428, 0.125
    %v528 = vmul.f32 %v434, 0.125
    %v529 = vmul.f32 %v440, 0.125
    %v530 = vmul.f32 %v446, 0.125
    %v531 = vmul.f32 %v452, 0.125
    %v532 = vmul.f32 %v458, 0.125
    %v533 = vmul.f32 %v464, 0.125
    %v534 = vmul.f32 %v470, 0.125
    %vm599 = vcmask 1041409
    %v600 = vsel %vm599, %v472, %v471
    %vm601 = vcmask 1042434
    %v602 = vsel %vm601, %v473, %v600
    %vm603 = vcmask 1043459
    %v604 = vsel %vm603, %v474, %v602
    %vm605 = vcmask 1044484
    %v606 = vsel %vm605, %v475, %v604
    %vm607 = vcmask 1045509
    %v608 = vsel %vm607, %v476, %v606
    %vm609 = vcmask 1046534
    %v610 = vsel %vm609, %v477, %v608
    %vm611 = vcmask 1047559
    %v612 = vsel %vm611, %v478, %v610
    %v613 = vsel %vm599, %v480, %v479
    %v614 = vsel %vm601, %v481, %v613
    %v615 = vsel %vm603, %v482, %v614
    %v616 = vsel %vm605, %v483, %v615
    %v617 = vsel %vm607, %v484, %v616
    %v618 = vsel %vm609, %v485, %v617
    %v619 = vsel %vm611, %v486, %v618
    %v620 = vsel %vm599, %v488, %v487
    %v621 = vsel %vm601, %v489, %v620
    %v622 = vsel %vm603, %v490, %v621
    %v623 = vsel %vm605, %v491, %v622
    %v624 = vsel %vm607, %v492, %v623
    %v625 = vsel %vm609, %v493, %v624
    %v626 = vsel %vm611, %v494, %v625
    %v627 = vsel %vm599, %v496, %v495
    %v628 = vsel %vm601, %v497, %v627
    %v629 = vsel %vm603, %v498, %v628
    %v630 = vsel %vm605, %v499, %v629
    %v631 = vsel %vm607, %v500, %v630
    %v632 = vsel %vm609, %v501, %v631
    %v633 = vsel %vm611, %v502, %v632
    %v634 = vsel %vm599, %v504, %v503
    %v635 = vsel %vm601, %v505, %v634
    %v636 = vsel %vm603, %v506, %v635
    %v637 = vsel %vm605, %v507, %v636
    %v638 = vsel %vm607, %v508, %v637
    %v639 = vsel %vm609, %v509, %v638
    %v640 = vsel %vm611, %v510, %v639
    %v641 = vsel %vm599, %v512, %v511
    %v642 = vsel %vm601, %v513, %v641
    %v643 = vsel %vm603, %v514, %v642
    %v644 = vsel %vm605, %v515, %v643
    %v645 = vsel %vm607, %v516, %v644
    %v646 = vsel %vm609, %v517, %v645
    %v647 = vsel %vm611, %v518, %v646
    %v648 = vsel %vm599, %v520, %v519
    %v649 = vsel %vm601, %v521, %v648
    %v650 = vsel %vm603, %v522, %v649
    %v651 = vsel %vm605, %v523, %v650
    %v652 = vsel %vm607, %v524, %v651
    %v653 = vsel %vm609, %v525, %v652
    %v654 = vsel %vm611, %v526, %v653
    %v655 = vsel %vm599, %v528, %v527
    %v656 = vsel %vm601, %v529, %v655
    %v657 = vsel %vm603, %v530, %v656
    %v658 = vsel %vm605, %v531, %v657
    %v659 = vsel %vm607, %v532, %v658
    %v660 = vsel %vm609, %v533, %v659
    %v661 = vsel %vm611, %v534, %v660
    %670 = vst [vmem:[#allocation5] sm:$0xff] %v612
    %671 = vst [vmem:[#allocation5 + $0x8] sm:$0xff] %v619
    %672 = vst [vmem:[#allocation5 + $0x10] sm:$0xff] %v626
    %673 = vst [vmem:[#allocation5 + $0x18] sm:$0xff] %v633
    %674 = vst [vmem:[#allocation5 + $0x20] sm:$0xff] %v640
    %675 = vst [vmem:[#allocation5 + $0x28] sm:$0xff] %v647
    %676 = vst [vmem:[#allocation5 + $0x30] sm:$0xff] %v654
    %677 = vst [vmem:[#allocation5 + $0x38] sm:$0xff] %v661
    // Predicated region
    $region10: #{tpu_custom_call.1} parent=1 // pred_check
      _
    $region11: #{tpu_custom_call.1} parent=1 // pred_check_branch
      %679 = sbr.rel (0) target = $region13
    $region12: #{tpu_custom_call.1} parent=1 // pred_region
      %s681 = ssub.s32 1024, 1024
      %682 = vsyncadd [#allocation4], %s681
      %s683 = sshll.u32 [#allocation5], 4
      %s684 = int_to_ptr.vmem [resolvable:$true] %s683
      %689 = dma.vmem_to_hbm [thread:$0]  %s684, 1024, %s1, [#allocation4], 128, 128, 8
    $region13: #{tpu_custom_call.1} parent=1 // pred_fallthru
      _
    // Predicated region
    $region14: #{tpu_custom_call.1} parent=1 // pred_check
      _
    $region15: #{tpu_custom_call.1} parent=1 // pred_check_branch
      %691 = sbr.rel (0) target = $region17
    $region16: #{tpu_custom_call.1} parent=1 // pred_region
      %692 = dma.done [#allocation4], 1024
    $region17: #{tpu_custom_call.1} parent=1 // pred_fallthru
      _
    %693 = vsyncpa [#allocation3], 1
    %694 = vsyncpa [#allocation4], 1

</llo_original>
